<compile_context>
chip_gen: v5e
topology: v5e:2x2
jax: 0.10.0
libtpu: 0.0.40
codegen_flags: <defaults>
</compile_context>

<pallas_src>
import jax
import jax.numpy as jnp
from jax import lax
from jax.experimental import pallas as pl
from jax.experimental.pallas import tpu as pltpu

EPS = 1e-5
HIDDEN_SIZES = [128, 64, 32]


def _mlp_kernel(x_ref, w1_ref, b1_ref, w2_ref, b2_ref, w3_ref, b3_ref,
                w4_ref, b4_ref, o_ref):
    """Fused MLP forward on one batch tile.

    x tile is (TB, in); hidden activations are (features, TB); output (1, TB).
    """
    cdt = w1_ref.dtype  # MXU compute dtype (bf16 by default, f32 if exact)

    x = x_ref[...].astype(cdt)                                  # (TB, in)
    # Layer 1: contract the shared `in` dim of W1 (128, in) and x (TB, in).
    h = lax.dot_general(w1_ref[...], x, (((1,), (1,)), ((), ())),
                        preferred_element_type=jnp.float32)     # (128, TB)
    h = jnp.maximum(h + b1_ref[...], 0.0)

    h = jnp.maximum(
        jnp.dot(w2_ref[...], h.astype(cdt),
                preferred_element_type=jnp.float32) + b2_ref[...], 0.0)  # (64, TB)
    h = jnp.maximum(
        jnp.dot(w3_ref[...], h.astype(cdt),
                preferred_element_type=jnp.float32) + b3_ref[...], 0.0)  # (32, TB)

    # Final Linear(32, 1): VPU multiply + cross-sublane (XLU) reduce ->
    # lane-dense (1, TB) output. Kept in f32.
    o_ref[...] = jnp.sum(w4_ref[...] * h, axis=0, keepdims=True) + b4_ref[...]


def init_params(key, input_size, hidden_sizes=HIDDEN_SIZES):
    """PyTorch-layout params: W (out, in), b (out,); BN (gamma, beta, mean, var)."""
    dims = [input_size] + list(hidden_sizes) + [1]
    params = []
    for i in range(len(dims) - 1):
        fan_in, fan_out = dims[i], dims[i + 1]
        key, kw, kb = jax.random.split(key, 3)
        bound = 1.0 / float(fan_in) ** 0.5
        w = jax.random.uniform(kw, (fan_out, fan_in), jnp.float32, -bound, bound)
        b = jax.random.uniform(kb, (fan_out,), jnp.float32, -bound, bound)
        params.append((w, b))
    # Non-trivial BN running stats / affine so the fold is actually exercised.
    bn_params = []
    for h in hidden_sizes:
        key, kg, kb2, km, kv = jax.random.split(key, 5)
        gamma = 1.0 + 0.1 * jax.random.normal(kg, (h,), jnp.float32)
        beta = 0.1 * jax.random.normal(kb2, (h,), jnp.float32)
        mean = 0.1 * jax.random.normal(km, (h,), jnp.float32)
        var = 1.0 + 0.1 * jnp.abs(jax.random.normal(kv, (h,), jnp.float32))
        bn_params.append((gamma, beta, mean, var))
    return params, bn_params


def fold_batchnorm_into_linear(params, bn_params):
    """Fold eval-mode BN (applied after ReLU) into the following Linear (f32, exact).

    BN(a) = s*a + t with s = gamma*rsqrt(var+eps), t = beta - mean*s, so
    W_next @ BN(a) + b_next = (W_next * s) @ a + (W_next @ t + b_next).
    """
    w0, b0 = params[0]
    ws, bs = [w0], [b0]
    for i, (gamma, beta, mean, var) in enumerate(bn_params):
        s = gamma * jax.lax.rsqrt(var + EPS)
        t = beta - mean * s
        w_next, b_next = params[i + 1]
        ws.append(w_next * s[None, :])
        bs.append(w_next @ t + b_next)
    return ws, bs


def _cdiv(a, b):
    return -(-a // b)


def _round_up(n, m):
    return _cdiv(n, m) * m


def _choose_batch_tile(batch, block_batch):
    """Pick a 128-aligned batch tile that (a) amortizes per-step overhead,
    (b) gives >=2 grid steps when the batch allows (v7x megacore), and
    (c) keeps the last tile from being mostly padding."""
    rb = _round_up(batch, 128)
    tb = min(_round_up(max(block_batch, 128), 128), rb)
    if tb >= rb and rb >= 256:
        tb = _round_up(_cdiv(rb, 2), 128)       # force >=2 steps when possible
    n_steps = _cdiv(rb, tb)
    tb = _round_up(_cdiv(rb, n_steps), 128)     # size-aware re-balance
    return tb


def _vmem_cap_bytes():
    """Generation-aware scoped-VMEM cap: <=32 MiB on v7x, <=64 MiB on v5e/v6e."""
    try:
        phys = int(pltpu.get_tpu_info().vmem_capacity_bytes)
    except Exception:
        phys = 64 << 20  # conservative (v7x physical VMEM per TC)
    return min(64 << 20, max(phys // 2, 16 << 20))


def neural_network_forward(x, params, bn_params, *, block_batch=2048,
                           use_bf16=True):
    """x: (batch, input_size) -> (batch, 1) via the fused Pallas kernel (eval mode)."""
    batch, input_size = x.shape
    x = x.astype(jnp.float32)

    ws, bs = fold_batchnorm_into_linear(params, bn_params)
    mxu_dtype = jnp.bfloat16 if use_bf16 else jnp.float32
    w1, w2, w3 = (w.astype(mxu_dtype) for w in ws[:3])
    w4c = ws[3].reshape(-1, 1).astype(jnp.float32)   # (32, 1): VPU mul + reduce
    b1, b2, b3, b4 = (b.reshape(-1, 1).astype(jnp.float32) for b in bs)

    tb = _choose_batch_tile(batch, block_batch)
    n_steps = _cdiv(batch, tb)

    operands = (x, w1, b1, w2, b2, w3, b3, w4c, b4)
    param_bytes = sum(int(a.size) * a.dtype.itemsize for a in operands[1:])

    # Single-buffer the VMEM-resident weights only when they are large
    # (matters on v7x's 64 MiB VMEM at very large input_size).
    single_buffer_weights = param_bytes > (8 << 20)

    def const_spec(a):
        # Full-array block, constant index_map -> stays VMEM-resident.
        if single_buffer_weights:
            return pl.BlockSpec(a.shape, lambda i: (0, 0),
                                pipeline_mode=pl.Buffered(1))
        return pl.BlockSpec(a.shape, lambda i: (0, 0))

    in_specs = [pl.BlockSpec((tb, input_size), lambda i: (i, 0))]
    in_specs += [const_spec(a) for a in operands[1:]]
    # Output sized to n_steps*tb so every output block is full and lane-dense
    # (unmasked stores); the extra columns (a few KiB at most) are sliced off.
    out_spec = pl.BlockSpec((1, tb), lambda i: (0, i))

    # Scoped-VMEM budget: double-buffered x/out tiles + weights (+1 or 2 bufs)
    # + f32 intermediates h1/h2/h3, with 2x headroom for Mosaic scratch.
    x_tile = tb * input_size * 4
    out_tile = tb * 4
    act_bytes = tb * (128 + 64 + 32) * 4
    wb = 1 if single_buffer_weights else 2
    needed = 2 * (x_tile + out_tile) + wb * param_bytes + act_bytes
    vmem_limit = int(min(_vmem_cap_bytes(), max(2 * needed + (4 << 20), 8 << 20)))

    out = pl.pallas_call(
        _mlp_kernel,
        out_shape=jax.ShapeDtypeStruct((1, n_steps * tb), jnp.float32),
        grid=(n_steps,),
        in_specs=in_specs,
        out_specs=out_spec,
        compiler_params=pltpu.CompilerParams(
            dimension_semantics=("parallel",),
            vmem_limit_bytes=vmem_limit,
        ),
    )(*operands)

    return out[0, :batch].reshape(batch, 1)


def reference_forward(x, params, bn_params):
    """Pure-JAX, unfused f32 reference: Linear -> ReLU -> BN(eval) -> Dropout(id)."""
    h = x
    for i in range(len(bn_params)):
        w, b = params[i]
        g, be, m, v = bn_params[i]
        h = jnp.maximum(h @ w.T + b, 0.0)
        h = g * (h - m) * jax.lax.rsqrt(v + EPS) + be
    w4, b4 = params[-1]
    return h @ w4.T + b4


if __name__ == "__main__":
    key = jax.random.PRNGKey(0)
    key, kx, kp = jax.random.split(key, 3)

    batch, input_size = 8, 32
    x = jax.random.normal(kx, (batch, input_size), jnp.float32)
    params, bn_params = init_params(kp, input_size, HIDDEN_SIZES)
    ref = reference_forward(x, params, bn_params)

    # Exact f32 MXU path: validates BN fold + kernel plumbing tightly.
    out_f32 = jax.block_until_ready(
        neural_network_forward(x, params, bn_params, use_bf16=False))
    assert out_f32.shape == (batch, 1), out_f32.shape
    assert jnp.allclose(out_f32, ref, atol=1e-4, rtol=1e-4), (
        f"f32 mismatch: max abs err {float(jnp.max(jnp.abs(out_f32 - ref)))}")

    # Default bf16-MXU path (documented accuracy tradeoff, f32 accumulation).
    out_bf16 = jax.block_until_ready(neural_network_forward(x, params, bn_params))
    assert out_bf16.shape == (batch, 1), out_bf16.shape
    assert jnp.allclose(out_bf16, ref, atol=3e-2, rtol=3e-2), (
        f"bf16 mismatch: max abs err {float(jnp.max(jnp.abs(out_bf16 - ref)))}")

    # Multi-tile grid with a ragged last block (2 grid steps, no host pad).
    key, kx2 = jax.random.split(key)
    batch2 = 200
    x2 = jax.random.normal(kx2, (batch2, input_size), jnp.float32)
    out2 = jax.block_until_ready(
        neural_network_forward(x2, params, bn_params, block_batch=128))
    ref2 = reference_forward(x2, params, bn_params)
    assert out2.shape == (batch2, 1), out2.shape
    assert jnp.allclose(out2, ref2, atol=3e-2, rtol=3e-2), (
        f"multi-tile mismatch: max abs err {float(jnp.max(jnp.abs(out2 - ref2)))}")

    print("KERNEL_OK")
</pallas_src>

<mosaic_0001>
module attributes {stable_mosaic.version = 11 : i64} {
  func.func @_mlp_kernel(%arg0: i32, %arg1: memref<128x32xf32, #tpu.memory_space<vmem>>, %arg2: memref<128x32xf32, #tpu.memory_space<vmem>>, %arg3: memref<128x1xf32, #tpu.memory_space<vmem>>, %arg4: memref<64x128xf32, #tpu.memory_space<vmem>>, %arg5: memref<64x1xf32, #tpu.memory_space<vmem>>, %arg6: memref<32x64xf32, #tpu.memory_space<vmem>>, %arg7: memref<32x1xf32, #tpu.memory_space<vmem>>, %arg8: memref<32x1xf32, #tpu.memory_space<vmem>>, %arg9: memref<1x1xf32, #tpu.memory_space<vmem>>, %arg10: memref<1x128xf32, #tpu.memory_space<vmem>>) attributes {dimension_semantics = [#tpu.dimension_semantics<parallel>], iteration_bounds = array<i64: 1>, scalar_prefetch = 0 : i64, scratch_operands = 0 : i64, tpu.core_type = #tpu.core_type<tc>, window_params = [{transform_indices = @transform_0, window_bounds = array<i64: 128, 32>}, {pipeline_mode = #tpu.pipeline_mode<synchronous>, transform_indices = @transform_1, window_bounds = array<i64: 128, 32>}, {pipeline_mode = #tpu.pipeline_mode<synchronous>, transform_indices = @transform_2, window_bounds = array<i64: 128, 1>}, {pipeline_mode = #tpu.pipeline_mode<synchronous>, transform_indices = @transform_3, window_bounds = array<i64: 64, 128>}, {pipeline_mode = #tpu.pipeline_mode<synchronous>, transform_indices = @transform_4, window_bounds = array<i64: 64, 1>}, {pipeline_mode = #tpu.pipeline_mode<synchronous>, transform_indices = @transform_5, window_bounds = array<i64: 32, 64>}, {pipeline_mode = #tpu.pipeline_mode<synchronous>, transform_indices = @transform_6, window_bounds = array<i64: 32, 1>}, {pipeline_mode = #tpu.pipeline_mode<synchronous>, transform_indices = @transform_7, window_bounds = array<i64: 32, 1>}, {pipeline_mode = #tpu.pipeline_mode<synchronous>, transform_indices = @transform_8, window_bounds = array<i64: 1, 1>}, {transform_indices = @transform_9, window_bounds = array<i64: 1, 128>}]} {
    %c0 = arith.constant 0 : index
    %c0_0 = arith.constant 0 : index
    %0 = vector.load %arg1[%c0, %c0_0] : memref<128x32xf32, #tpu.memory_space<vmem>>, vector<128x32xf32>
    %c0_1 = arith.constant 0 : index
    %c0_2 = arith.constant 0 : index
    %1 = vector.load %arg2[%c0_1, %c0_2] : memref<128x32xf32, #tpu.memory_space<vmem>>, vector<128x32xf32>
    %cst = arith.constant dense<0.000000e+00> : vector<128x128xf32>
    %2 = tpu.matmul %1, %0, %cst {dimension_numbers = #tpu.dot_dimension_numbers<[1], [1], [0], [0], [0, 0, 1, 0], [], []>} : vector<128x32xf32>, vector<128x32xf32>, vector<128x128xf32> -> vector<128x128xf32>
    %c0_3 = arith.constant 0 : index
    %c0_4 = arith.constant 0 : index
    %3 = vector.load %arg3[%c0_3, %c0_4] : memref<128x1xf32, #tpu.memory_space<vmem>>, vector<128x1xf32>
    %4 = vector.broadcast %3 : vector<128x1xf32> to vector<128x128xf32>
    %5 = arith.addf %2, %4 : vector<128x128xf32>
    %cst_5 = arith.constant 0.000000e+00 : f32
    %6 = vector.broadcast %cst_5 : f32 to vector<128x128xf32>
    %7 = arith.maximumf %5, %6 : vector<128x128xf32>
    %c0_6 = arith.constant 0 : index
    %c0_7 = arith.constant 0 : index
    %8 = vector.load %arg4[%c0_6, %c0_7] : memref<64x128xf32, #tpu.memory_space<vmem>>, vector<64x128xf32>
    %cst_8 = arith.constant dense<0.000000e+00> : vector<64x128xf32>
    %9 = tpu.matmul %8, %7, %cst_8 {dimension_numbers = #tpu.dot_dimension_numbers<[1], [0], [0], [1], [0, 0, 1, 1], [], []>} : vector<64x128xf32>, vector<128x128xf32>, vector<64x128xf32> -> vector<64x128xf32>
    %c0_9 = arith.constant 0 : index
    %c0_10 = arith.constant 0 : index
    %10 = vector.load %arg5[%c0_9, %c0_10] : memref<64x1xf32, #tpu.memory_space<vmem>>, vector<64x1xf32>
    %11 = vector.broadcast %10 : vector<64x1xf32> to vector<64x128xf32>
    %12 = arith.addf %9, %11 : vector<64x128xf32>
    %cst_11 = arith.constant 0.000000e+00 : f32
    %13 = vector.broadcast %cst_11 : f32 to vector<64x128xf32>
    %14 = arith.maximumf %12, %13 : vector<64x128xf32>
    %c0_12 = arith.constant 0 : index
    %c0_13 = arith.constant 0 : index
    %15 = vector.load %arg6[%c0_12, %c0_13] : memref<32x64xf32, #tpu.memory_space<vmem>>, vector<32x64xf32>
    %cst_14 = arith.constant dense<0.000000e+00> : vector<32x128xf32>
    %16 = tpu.matmul %15, %14, %cst_14 {dimension_numbers = #tpu.dot_dimension_numbers<[1], [0], [0], [1], [0, 0, 1, 1], [], []>} : vector<32x64xf32>, vector<64x128xf32>, vector<32x128xf32> -> vector<32x128xf32>
    %c0_15 = arith.constant 0 : index
    %c0_16 = arith.constant 0 : index
    %17 = vector.load %arg7[%c0_15, %c0_16] : memref<32x1xf32, #tpu.memory_space<vmem>>, vector<32x1xf32>
    %18 = vector.broadcast %17 : vector<32x1xf32> to vector<32x128xf32>
    %19 = arith.addf %16, %18 : vector<32x128xf32>
    %cst_17 = arith.constant 0.000000e+00 : f32
    %20 = vector.broadcast %cst_17 : f32 to vector<32x128xf32>
    %21 = arith.maximumf %19, %20 : vector<32x128xf32>
    %c0_18 = arith.constant 0 : index
    %c0_19 = arith.constant 0 : index
    %22 = vector.load %arg8[%c0_18, %c0_19] : memref<32x1xf32, #tpu.memory_space<vmem>>, vector<32x1xf32>
    %23 = vector.broadcast %22 : vector<32x1xf32> to vector<32x128xf32>
    %24 = arith.mulf %23, %21 : vector<32x128xf32>
    %cst_20 = arith.constant dense<0.000000e+00> : vector<128xf32>
    %25 = vector.multi_reduction <add>, %24, %cst_20 [0] : vector<32x128xf32> to vector<128xf32>
    %26 = vector.shape_cast %25 : vector<128xf32> to vector<1x128xf32>
    %c0_21 = arith.constant 0 : index
    %c0_22 = arith.constant 0 : index
    %27 = vector.load %arg9[%c0_21, %c0_22] : memref<1x1xf32, #tpu.memory_space<vmem>>, vector<1x1xf32>
    %28 = vector.broadcast %27 : vector<1x1xf32> to vector<1x128xf32>
    %29 = arith.addf %26, %28 : vector<1x128xf32>
    %c0_23 = arith.constant 0 : index
    %c0_24 = arith.constant 0 : index
    %30 = vector.load %arg10[%c0_23, %c0_24] : memref<1x128xf32, #tpu.memory_space<vmem>>, vector<1x128xf32>
    tpu.vector_store %arg10[%c0_23, %c0_24], %29 {strides = array<i32>} : memref<1x128xf32, #tpu.memory_space<vmem>>, vector<1x128xf32>,
    return
  }
  func.func @transform_0(%arg0: i32) -> (i32, i32) {
    %c0_i32 = arith.constant 0 : i32
    %c0_i32_0 = arith.constant 0 : i32
    return %arg0, %c0_i32 : i32, i32
  }
  func.func @transform_1(%arg0: i32) -> (i32, i32) {
    %c0_i32 = arith.constant 0 : i32
    %c0_i32_0 = arith.constant 0 : i32
    %c0_i32_1 = arith.constant 0 : i32
    return %c0_i32, %c0_i32_0 : i32, i32
  }
  func.func @transform_2(%arg0: i32) -> (i32, i32) {
    %c0_i32 = arith.constant 0 : i32
    %c0_i32_0 = arith.constant 0 : i32
    %c0_i32_1 = arith.constant 0 : i32
    return %c0_i32, %c0_i32_0 : i32, i32
  }
  func.func @transform_3(%arg0: i32) -> (i32, i32) {
    %c0_i32 = arith.constant 0 : i32
    %c0_i32_0 = arith.constant 0 : i32
    %c0_i32_1 = arith.constant 0 : i32
    return %c0_i32, %c0_i32_0 : i32, i32
  }
  func.func @transform_4(%arg0: i32) -> (i32, i32) {
    %c0_i32 = arith.constant 0 : i32
    %c0_i32_0 = arith.constant 0 : i32
    %c0_i32_1 = arith.constant 0 : i32
    return %c0_i32, %c0_i32_0 : i32, i32
  }
  func.func @transform_5(%arg0: i32) -> (i32, i32) {
    %c0_i32 = arith.constant 0 : i32
    %c0_i32_0 = arith.constant 0 : i32
    %c0_i32_1 = arith.constant 0 : i32
    return %c0_i32, %c0_i32_0 : i32, i32
  }
  func.func @transform_6(%arg0: i32) -> (i32, i32) {
    %c0_i32 = arith.constant 0 : i32
    %c0_i32_0 = arith.constant 0 : i32
    %c0_i32_1 = arith.constant 0 : i32
    return %c0_i32, %c0_i32_0 : i32, i32
  }
  func.func @transform_7(%arg0: i32) -> (i32, i32) {
    %c0_i32 = arith.constant 0 : i32
    %c0_i32_0 = arith.constant 0 : i32
    %c0_i32_1 = arith.constant 0 : i32
    return %c0_i32, %c0_i32_0 : i32, i32
  }
  func.func @transform_8(%arg0: i32) -> (i32, i32) {
    %c0_i32 = arith.constant 0 : i32
    %c0_i32_0 = arith.constant 0 : i32
    %c0_i32_1 = arith.constant 0 : i32
    return %c0_i32, %c0_i32_0 : i32, i32
  }
  func.func @transform_9(%arg0: i32) -> (i32, i32) {
    %c0_i32 = arith.constant 0 : i32
    %c0_i32_0 = arith.constant 0 : i32
    return %c0_i32, %arg0 : i32, i32
  }
}

</mosaic_0001>

<llo_original>
// kernel: tpu_custom_call.1
$region0: #{tpu_custom_call.1}
  #allocation0 [shape = 'u32[]', space=smem, size = 0x4, offset = 0x4, fixed_abs, tag = 'smem constant byte address 0x4 - core index']
  #allocation1 [shape = 'u32[72,128]{1,0:T(1,128)}', space=vmem, size = 0x9000, scoped, tag = 'internal scratch']
  #allocation2 [shape = 'f32[1,1]{1,0:T(1,128)S(1)}', space=vmem, size = 0x200, scoped, tag = 'scoped memory for tpu_custom_call.1']
  %s0 = inlined_call_operand.vmem [shape: f32[8,32], index: 0, kind: input, shape index: {}]
  %s1 = inlined_call_operand.vmem [shape: f32[128,32], index: 1, kind: input, shape index: {}]
  %s2 = inlined_call_operand.vmem [shape: f32[128,1], index: 2, kind: input, shape index: {}]
  %s3 = inlined_call_operand.vmem [shape: f32[64,128], index: 3, kind: input, shape index: {}]
  %s4 = inlined_call_operand.vmem [shape: f32[64,1], index: 4, kind: input, shape index: {}]
  %s5 = inlined_call_operand.vmem [shape: f32[32,64], index: 5, kind: input, shape index: {}]
  %s6 = inlined_call_operand.vmem [shape: f32[32,1], index: 6, kind: input, shape index: {}]
  %s7 = inlined_call_operand.vmem [shape: f32[32,1], index: 7, kind: input, shape index: {}]
  %s8 = inlined_call_operand.<no memory space> [shape: f32[1,1], index: 8, kind: input, shape index: {}]
  %s9 = inlined_call_operand.hbm [shape: f32[1,128], index: 9, kind: output, shape index: {}]
  %s10 = sld [smem:[#allocation0]]
  $region46: #{tpu_custom_call.1} parent=0
    _
  %s12 = ssub.s32 1, %s10
  %s13 = scalar_select 0, %s12, %s10
  %v14 = vstv %s8
  %15 = vst [vmem:[#allocation2] sm:$0x1] %v14
  $region1: #{tpu_custom_call.1} parent=0
    #allocation3 [shape = 'u8[512]{0}', space=vmem, size = 0x400, scoped, tag = 'output window, operand 0, single buffered']
    #allocation4 [shape = 's32[1]{0}', space=sflag, size = 0x4, scoped, tag = 'scoped memory for tpu_custom_call.1']
    %16 = vsyncpa [#allocation4], 0
    // Predicated region
    $region2: #{tpu_custom_call.1} parent=1 // pred_check
      _
    $region3: #{tpu_custom_call.1} parent=1 // pred_check_branch
      %18 = sbr.rel (0) target = $region5
    $region4: #{tpu_custom_call.1} parent=1 // pred_region
      _
    $region5: #{tpu_custom_call.1} parent=1 // pred_fallthru
      _
    // Predicated region
    $region6: #{tpu_custom_call.1} parent=1 // pred_check
      _
    $region7: #{tpu_custom_call.1} parent=1 // pred_check_branch
      %20 = sbr.rel (0) target = $region9
    $region8: #{tpu_custom_call.1} parent=1 // pred_region
      _
    $region9: #{tpu_custom_call.1} parent=1 // pred_fallthru
      _
    // Predicated region
    $region10: #{tpu_custom_call.1} parent=1 // pred_check
      _
    $region11: #{tpu_custom_call.1} parent=1 // pred_check_branch
      %22 = sbr.rel (0) target = $region13
    $region12: #{tpu_custom_call.1} parent=1 // pred_region
      _
    $region13: #{tpu_custom_call.1} parent=1 // pred_fallthru
      _
    // Predicated region
    $region14: #{tpu_custom_call.1} parent=1 // pred_check
      _
    $region15: #{tpu_custom_call.1} parent=1 // pred_check_branch
      %24 = sbr.rel (0) target = $region17
    $region16: #{tpu_custom_call.1} parent=1 // pred_region
      _
    $region17: #{tpu_custom_call.1} parent=1 // pred_fallthru
      _
    // Predicated region
    $region18: #{tpu_custom_call.1} parent=1 // pred_check
      _
    $region19: #{tpu_custom_call.1} parent=1 // pred_check_branch
      %26 = sbr.rel (0) target = $region21
    $region20: #{tpu_custom_call.1} parent=1 // pred_region
      _
    $region21: #{tpu_custom_call.1} parent=1 // pred_fallthru
      _
    // Predicated region
    $region22: #{tpu_custom_call.1} parent=1 // pred_check
      _
    $region23: #{tpu_custom_call.1} parent=1 // pred_check_branch
      %28 = sbr.rel (0) target = $region25
    $region24: #{tpu_custom_call.1} parent=1 // pred_region
      _
    $region25: #{tpu_custom_call.1} parent=1 // pred_fallthru
      _
    // Predicated region
    $region26: #{tpu_custom_call.1} parent=1 // pred_check
      _
    $region27: #{tpu_custom_call.1} parent=1 // pred_check_branch
      %30 = sbr.rel (0) target = $region29
    $region28: #{tpu_custom_call.1} parent=1 // pred_region
      _
    $region29: #{tpu_custom_call.1} parent=1 // pred_fallthru
      _
    // Predicated region
    $region30: #{tpu_custom_call.1} parent=1 // pred_check
      _
    $region31: #{tpu_custom_call.1} parent=1 // pred_check_branch
      %32 = sbr.rel (0) target = $region33
    $region32: #{tpu_custom_call.1} parent=1 // pred_region
      _
    $region33: #{tpu_custom_call.1} parent=1 // pred_fallthru
      _
    // Predicated region
    $region34: #{tpu_custom_call.1} parent=1 // pred_check
      _
    $region35: #{tpu_custom_call.1} parent=1 // pred_check_branch
      %34 = sbr.rel (0) target = $region37
    $region36: #{tpu_custom_call.1} parent=1 // pred_region
      _
    $region37: #{tpu_custom_call.1} parent=1 // pred_fallthru
      _
    %v35 = vld [vmem:[%s0] sm:$0xff]
    %v36 = vld [vmem:[%s0 + $0x8] sm:$0xff]
    %v37 = vld [vmem:[%s0 + $0x10] sm:$0xff]
    %v38 = vld [vmem:[%s0 + $0x18] sm:$0xff]
    %v39 = vld [vmem:[%s0 + $0x20] sm:$0xff]
    %v40 = vld [vmem:[%s0 + $0x28] sm:$0xff]
    %v41 = vld [vmem:[%s0 + $0x30] sm:$0xff]
    %v42 = vld [vmem:[%s0 + $0x38] sm:$0xff]
    %v43 = vld [vmem:[%s0 + $0x40] sm:$0xff]
    %v44 = vld [vmem:[%s0 + $0x48] sm:$0xff]
    %v45 = vld [vmem:[%s0 + $0x50] sm:$0xff]
    %v46 = vld [vmem:[%s0 + $0x58] sm:$0xff]
    %v47 = vld [vmem:[%s0 + $0x60] sm:$0xff]
    %v48 = vld [vmem:[%s0 + $0x68] sm:$0xff]
    %v49 = vld [vmem:[%s0 + $0x70] sm:$0xff]
    %v50 = vld [vmem:[%s0 + $0x78] sm:$0xff]
    %v51 = vld [vmem:[%s1] sm:$0xff]
    %v52 = vld [vmem:[%s1 + $0x8] sm:$0xff]
    %v53 = vld [vmem:[%s1 + $0x10] sm:$0xff]
    %v54 = vld [vmem:[%s1 + $0x18] sm:$0xff]
    %v55 = vld [vmem:[%s1 + $0x20] sm:$0xff]
    %v56 = vld [vmem:[%s1 + $0x28] sm:$0xff]
    %v57 = vld [vmem:[%s1 + $0x30] sm:$0xff]
    %v58 = vld [vmem:[%s1 + $0x38] sm:$0xff]
    %v59 = vld [vmem:[%s1 + $0x40] sm:$0xff]
    %v60 = vld [vmem:[%s1 + $0x48] sm:$0xff]
    %v61 = vld [vmem:[%s1 + $0x50] sm:$0xff]
    %v62 = vld [vmem:[%s1 + $0x58] sm:$0xff]
    %v63 = vld [vmem:[%s1 + $0x60] sm:$0xff]
    %v64 = vld [vmem:[%s1 + $0x68] sm:$0xff]
    %v65 = vld [vmem:[%s1 + $0x70] sm:$0xff]
    %v66 = vld [vmem:[%s1 + $0x78] sm:$0xff]
    %v67 = vld [vmem:[%s2] sm:$0xff]
    %v68 = vld [vmem:[%s2 + $0x8] sm:$0xff]
    %v69 = vld [vmem:[%s2 + $0x10] sm:$0xff]
    %v70 = vld [vmem:[%s2 + $0x18] sm:$0xff]
    %v71 = vld [vmem:[%s2 + $0x20] sm:$0xff]
    %v72 = vld [vmem:[%s2 + $0x28] sm:$0xff]
    %v73 = vld [vmem:[%s2 + $0x30] sm:$0xff]
    %v74 = vld [vmem:[%s2 + $0x38] sm:$0xff]
    %v75 = vld [vmem:[%s2 + $0x40] sm:$0xff]
    %v76 = vld [vmem:[%s2 + $0x48] sm:$0xff]
    %v77 = vld [vmem:[%s2 + $0x50] sm:$0xff]
    %v78 = vld [vmem:[%s2 + $0x58] sm:$0xff]
    %v79 = vld [vmem:[%s2 + $0x60] sm:$0xff]
    %v80 = vld [vmem:[%s2 + $0x68] sm:$0xff]
    %v81 = vld [vmem:[%s2 + $0x70] sm:$0xff]
    %v82 = vld [vmem:[%s2 + $0x78] sm:$0xff]
    %84 = vset.pattern.permute.xlu0 0
    %85 = vperm.xlu0 %84, %v67
    %v86 = vpop.permute.xlu0 %85
    %89 = vset.pattern.permute.xlu0 0
    %90 = vperm.xlu0 %89, %v68
    %v91 = vpop.permute.xlu0 %90
    %94 = vset.pattern.permute.xlu0 0
    %95 = vperm.xlu0 %94, %v69
    %v96 = vpop.permute.xlu0 %95
    %99 = vset.pattern.permute.xlu0 0
    %100 = vperm.xlu0 %99, %v70
    %v101 = vpop.permute.xlu0 %100
    %104 = vset.pattern.permute.xlu0 0
    %105 = vperm.xlu0 %104, %v71
    %v106 = vpop.permute.xlu0 %105
    %109 = vset.pattern.permute.xlu0 0
    %110 = vperm.xlu0 %109, %v72
    %v111 = vpop.permute.xlu0 %110
    %114 = vset.pattern.permute.xlu0 0
    %115 = vperm.xlu0 %114, %v73
    %v116 = vpop.permute.xlu0 %115
    %119 = vset.pattern.permute.xlu0 0
    %120 = vperm.xlu0 %119, %v74
    %v121 = vpop.permute.xlu0 %120
    %124 = vset.pattern.permute.xlu0 0
    %125 = vperm.xlu0 %124, %v75
    %v126 = vpop.permute.xlu0 %125
    %129 = vset.pattern.permute.xlu0 0
    %130 = vperm.xlu0 %129, %v76
    %v131 = vpop.permute.xlu0 %130
    %134 = vset.pattern.permute.xlu0 0
    %135 = vperm.xlu0 %134, %v77
    %v136 = vpop.permute.xlu0 %135
    %139 = vset.pattern.permute.xlu0 0
    %140 = vperm.xlu0 %139, %v78
    %v141 = vpop.permute.xlu0 %140
    %144 = vset.pattern.permute.xlu0 0
    %145 = vperm.xlu0 %144, %v79
    %v146 = vpop.permute.xlu0 %145
    %149 = vset.pattern.permute.xlu0 0
    %150 = vperm.xlu0 %149, %v80
    %v151 = vpop.permute.xlu0 %150
    %154 = vset.pattern.permute.xlu0 0
    %155 = vperm.xlu0 %154, %v81
    %v156 = vpop.permute.xlu0 %155
    %159 = vset.pattern.permute.xlu0 0
    %160 = vperm.xlu0 %159, %v82
    %v161 = vpop.permute.xlu0 %160
    %vm163 = vcmask 261120
    %v165 = vsel %vm163, %v51, 0
    %v168 = vsel %vm163, %v52, 0
    %v171 = vsel %vm163, %v53, 0
    %v174 = vsel %vm163, %v54, 0
    %v177 = vsel %vm163, %v55, 0
    %v180 = vsel %vm163, %v56, 0
    %v183 = vsel %vm163, %v57, 0
    %v186 = vsel %vm163, %v58, 0
    %v189 = vsel %vm163, %v59, 0
    %v192 = vsel %vm163, %v60, 0
    %v195 = vsel %vm163, %v61, 0
    %v198 = vsel %vm163, %v62, 0
    %v201 = vsel %vm163, %v63, 0
    %v204 = vsel %vm163, %v64, 0
    %v207 = vsel %vm163, %v65, 0
    %v210 = vsel %vm163, %v66, 0
    %v213 = vsel %vm163, %v35, 0
    %v216 = vsel %vm163, %v36, 0
    %v219 = vsel %vm163, %v37, 0
    %v222 = vsel %vm163, %v38, 0
    %v225 = vsel %vm163, %v39, 0
    %v228 = vsel %vm163, %v40, 0
    %v231 = vsel %vm163, %v41, 0
    %v234 = vsel %vm163, %v42, 0
    %v237 = vsel %vm163, %v43, 0
    %v240 = vsel %vm163, %v44, 0
    %v243 = vsel %vm163, %v45, 0
    %v246 = vsel %vm163, %v46, 0
    %v249 = vsel %vm163, %v47, 0
    %v252 = vsel %vm163, %v48, 0
    %v255 = vsel %vm163, %v49, 0
    %v258 = vsel %vm163, %v50, 0
    %260 = vmatpush.xpose.msra.mxu0 %v258
    %261 = vmatpush.xpose.msra.mxu0 %v255
    %262 = vmatpush.xpose.msra.mxu0 %v252
    %263 = vmatpush.xpose.msra.mxu0 %v249
    %264 = vmatpush.xpose.msra.mxu0 %v246
    %265 = vmatpush.xpose.msra.mxu0 %v243
    %266 = vmatpush.xpose.msra.mxu0 %v240
    %267 = vmatpush.xpose.msra.mxu0 %v237
    %268 = vmatpush.xpose.msra.mxu0 %v234
    %269 = vmatpush.xpose.msra.mxu0 %v231
    %270 = vmatpush.xpose.msra.mxu0 %v228
    %271 = vmatpush.xpose.msra.mxu0 %v225
    %272 = vmatpush.xpose.msra.mxu0 %v222
    %273 = vmatpush.xpose.msra.mxu0 %v219
    %274 = vmatpush.xpose.msra.mxu0 %v216
    %275 = vmatpush.xpose.msra.mxu0 %v213
    %276 = vmatmul.f32.gmra.mxu0 %v165
    %v277 = vpop.f32.mrf.mxu0
    %v278 = vadd.f32 %v86, %v277
    %279 = vmatmul.f32.gmra.mxu0 %v168
    %v280 = vpop.f32.mrf.mxu0
    %v281 = vadd.f32 %v91, %v280
    %282 = vmatmul.f32.gmra.mxu0 %v171
    %v283 = vpop.f32.mrf.mxu0
    %v284 = vadd.f32 %v96, %v283
    %285 = vmatmul.f32.gmra.mxu0 %v174
    %v286 = vpop.f32.mrf.mxu0
    %v287 = vadd.f32 %v101, %v286
    %288 = vmatmul.f32.gmra.mxu0 %v177
    %v289 = vpop.f32.mrf.mxu0
    %v290 = vadd.f32 %v106, %v289
    %291 = vmatmul.f32.gmra.mxu0 %v180
    %v292 = vpop.f32.mrf.mxu0
    %v293 = vadd.f32 %v111, %v292
    %294 = vmatmul.f32.gmra.mxu0 %v183
    %v295 = vpop.f32.mrf.mxu0
    %v296 = vadd.f32 %v116, %v295
    %297 = vmatmul.f32.gmra.mxu0 %v186
    %v298 = vpop.f32.mrf.mxu0
    %v299 = vadd.f32 %v121, %v298
    %300 = vmatmul.f32.gmra.mxu0 %v189
    %v301 = vpop.f32.mrf.mxu0
    %v302 = vadd.f32 %v126, %v301
    %303 = vmatmul.f32.gmra.mxu0 %v192
    %v304 = vpop.f32.mrf.mxu0
    %v305 = vadd.f32 %v131, %v304
    %306 = vmatmul.f32.gmra.mxu0 %v195
    %v307 = vpop.f32.mrf.mxu0
    %v308 = vadd.f32 %v136, %v307
    %309 = vmatmul.f32.gmra.mxu0 %v198
    %v310 = vpop.f32.mrf.mxu0
    %v311 = vadd.f32 %v141, %v310
    %312 = vmatmul.f32.gmra.mxu0 %v201
    %v313 = vpop.f32.mrf.mxu0
    %v314 = vadd.f32 %v146, %v313
    %315 = vmatmul.f32.gmra.mxu0 %v204
    %v316 = vpop.f32.mrf.mxu0
    %v317 = vadd.f32 %v151, %v316
    %318 = vmatmul.f32.gmra.mxu0 %v207
    %v319 = vpop.f32.mrf.mxu0
    %v320 = vadd.f32 %v156, %v319
    %321 = vmatmul.f32.gmra.mxu0 %v210
    %v322 = vpop.f32.mrf.mxu0
    %v323 = vadd.f32 %v161, %v322
    %324 = vdwg.mxu0
    %v325 = vmax.f32 %v278, 0.0
    %v326 = vmax.f32 %v281, 0.0
    %v327 = vmax.f32 %v284, 0.0
    %v328 = vmax.f32 %v287, 0.0
    %v329 = vmax.f32 %v290, 0.0
    %v330 = vmax.f32 %v293, 0.0
    %v331 = vmax.f32 %v296, 0.0
    %v332 = vmax.f32 %v299, 0.0
    %v333 = vmax.f32 %v302, 0.0
    %v334 = vmax.f32 %v305, 0.0
    %v335 = vmax.f32 %v308, 0.0
    %v336 = vmax.f32 %v311, 0.0
    %v337 = vmax.f32 %v314, 0.0
    %v338 = vmax.f32 %v317, 0.0
    %v339 = vmax.f32 %v320, 0.0
    %v340 = vmax.f32 %v323, 0.0
    %v341 = vld [vmem:[%s3] sm:$0xff]
    %v342 = vld [vmem:[%s3 + $0x8] sm:$0xff]
    %v343 = vld [vmem:[%s3 + $0x10] sm:$0xff]
    %v344 = vld [vmem:[%s3 + $0x18] sm:$0xff]
    %v345 = vld [vmem:[%s3 + $0x20] sm:$0xff]
    %v346 = vld [vmem:[%s3 + $0x28] sm:$0xff]
    %v347 = vld [vmem:[%s3 + $0x30] sm:$0xff]
    %v348 = vld [vmem:[%s3 + $0x38] sm:$0xff]
    %v349 = vld [vmem:[%s4] sm:$0xff]
    %v350 = vld [vmem:[%s4 + $0x8] sm:$0xff]
    %v351 = vld [vmem:[%s4 + $0x10] sm:$0xff]
    %v352 = vld [vmem:[%s4 + $0x18] sm:$0xff]
    %v353 = vld [vmem:[%s4 + $0x20] sm:$0xff]
    %v354 = vld [vmem:[%s4 + $0x28] sm:$0xff]
    %v355 = vld [vmem:[%s4 + $0x30] sm:$0xff]
    %v356 = vld [vmem:[%s4 + $0x38] sm:$0xff]
    %358 = vset.pattern.permute.xlu0 0
    %359 = vperm.xlu0 %358, %v349
    %v360 = vpop.permute.xlu0 %359
    %363 = vset.pattern.permute.xlu0 0
    %364 = vperm.xlu0 %363, %v350
    %v365 = vpop.permute.xlu0 %364
    %368 = vset.pattern.permute.xlu0 0
    %369 = vperm.xlu0 %368, %v351
    %v370 = vpop.permute.xlu0 %369
    %373 = vset.pattern.permute.xlu0 0
    %374 = vperm.xlu0 %373, %v352
    %v375 = vpop.permute.xlu0 %374
    %378 = vset.pattern.permute.xlu0 0
    %379 = vperm.xlu0 %378, %v353
    %v380 = vpop.permute.xlu0 %379
    %383 = vset.pattern.permute.xlu0 0
    %384 = vperm.xlu0 %383, %v354
    %v385 = vpop.permute.xlu0 %384
    %388 = vset.pattern.permute.xlu0 0
    %389 = vperm.xlu0 %388, %v355
    %v390 = vpop.permute.xlu0 %389
    %393 = vset.pattern.permute.xlu0 0
    %394 = vperm.xlu0 %393, %v356
    %v395 = vpop.permute.xlu0 %394
    %397 = vmatpush.msra.mxu0 %v340
    %398 = vmatpush.msra.mxu0 %v339
    %399 = vmatpush.msra.mxu0 %v338
    %400 = vmatpush.msra.mxu0 %v337
    %401 = vmatpush.msra.mxu0 %v336
    %402 = vmatpush.msra.mxu0 %v335
    %403 = vmatpush.msra.mxu0 %v334
    %404 = vmatpush.msra.mxu0 %v333
    %405 = vmatpush.msra.mxu0 %v332
    %406 = vmatpush.msra.mxu0 %v331
    %407 = vmatpush.msra.mxu0 %v330
    %408 = vmatpush.msra.mxu0 %v329
    %409 = vmatpush.msra.mxu0 %v328
    %410 = vmatpush.msra.mxu0 %v327
    %411 = vmatpush.msra.mxu0 %v326
    %412 = vmatpush.msra.mxu0 %v325
    %413 = vmatmul.f32.gmra.mxu0 %v341
    %v414 = vpop.f32.mrf.mxu0
    %v415 = vadd.f32 %v360, %v414
    %416 = vmatmul.f32.gmra.mxu0 %v342
    %v417 = vpop.f32.mrf.mxu0
    %v418 = vadd.f32 %v365, %v417
    %419 = vmatmul.f32.gmra.mxu0 %v343
    %v420 = vpop.f32.mrf.mxu0
    %v421 = vadd.f32 %v370, %v420
    %422 = vmatmul.f32.gmra.mxu0 %v344
    %v423 = vpop.f32.mrf.mxu0
    %v424 = vadd.f32 %v375, %v423
    %425 = vmatmul.f32.gmra.mxu0 %v345
    %v426 = vpop.f32.mrf.mxu0
    %v427 = vadd.f32 %v380, %v426
    %428 = vmatmul.f32.gmra.mxu0 %v346
    %v429 = vpop.f32.mrf.mxu0
    %v430 = vadd.f32 %v385, %v429
    %431 = vmatmul.f32.gmra.mxu0 %v347
    %v432 = vpop.f32.mrf.mxu0
    %v433 = vadd.f32 %v390, %v432
    %434 = vmatmul.f32.gmra.mxu0 %v348
    %v435 = vpop.f32.mrf.mxu0
    %v436 = vadd.f32 %v395, %v435
    %437 = vdwg.mxu0
    %v438 = vmax.f32 %v415, 0.0
    %v439 = vmax.f32 %v418, 0.0
    %v440 = vmax.f32 %v421, 0.0
    %v441 = vmax.f32 %v424, 0.0
    %v442 = vmax.f32 %v427, 0.0
    %v443 = vmax.f32 %v430, 0.0
    %v444 = vmax.f32 %v433, 0.0
    %v445 = vmax.f32 %v436, 0.0
    %v446 = vld [vmem:[%s5] sm:$0xff]
    %v447 = vld [vmem:[%s5 + $0x8] sm:$0xff]
    %v448 = vld [vmem:[%s5 + $0x10] sm:$0xff]
    %v449 = vld [vmem:[%s5 + $0x18] sm:$0xff]
    %v450 = vld [vmem:[%s6] sm:$0xff]
    %v451 = vld [vmem:[%s6 + $0x8] sm:$0xff]
    %v452 = vld [vmem:[%s6 + $0x10] sm:$0xff]
    %v453 = vld [vmem:[%s6 + $0x18] sm:$0xff]
    %455 = vset.pattern.permute.xlu0 0
    %456 = vperm.xlu0 %455, %v450
    %v457 = vpop.permute.xlu0 %456
    %460 = vset.pattern.permute.xlu0 0
    %461 = vperm.xlu0 %460, %v451
    %v462 = vpop.permute.xlu0 %461
    %465 = vset.pattern.permute.xlu0 0
    %466 = vperm.xlu0 %465, %v452
    %v467 = vpop.permute.xlu0 %466
    %470 = vset.pattern.permute.xlu0 0
    %471 = vperm.xlu0 %470, %v453
    %v472 = vpop.permute.xlu0 %471
    %vm474 = vcmask 523264
    %v476 = vsel %vm474, %v446, 0
    %v479 = vsel %vm474, %v447, 0
    %v482 = vsel %vm474, %v448, 0
    %v485 = vsel %vm474, %v449, 0
    %487 = vmatpush.msra.mxu0 0.0
    %488 = vmatpush.msra.mxu0 0.0
    %489 = vmatpush.msra.mxu0 0.0
    %490 = vmatpush.msra.mxu0 0.0
    %491 = vmatpush.msra.mxu0 0.0
    %492 = vmatpush.msra.mxu0 0.0
    %493 = vmatpush.msra.mxu0 0.0
    %494 = vmatpush.msra.mxu0 0.0
    %495 = vmatpush.msra.mxu0 %v445
    %496 = vmatpush.msra.mxu0 %v444
    %497 = vmatpush.msra.mxu0 %v443
    %498 = vmatpush.msra.mxu0 %v442
    %499 = vmatpush.msra.mxu0 %v441
    %500 = vmatpush.msra.mxu0 %v440
    %501 = vmatpush.msra.mxu0 %v439
    %502 = vmatpush.msra.mxu0 %v438
    %503 = vmatmul.f32.gmra.mxu0 %v476
    %v504 = vpop.f32.mrf.mxu0
    %v505 = vadd.f32 %v457, %v504
    %506 = vmatmul.f32.gmra.mxu0 %v479
    %v507 = vpop.f32.mrf.mxu0
    %v508 = vadd.f32 %v462, %v507
    %509 = vmatmul.f32.gmra.mxu0 %v482
    %v510 = vpop.f32.mrf.mxu0
    %v511 = vadd.f32 %v467, %v510
    %512 = vmatmul.f32.gmra.mxu0 %v485
    %v513 = vpop.f32.mrf.mxu0
    %v514 = vadd.f32 %v472, %v513
    %515 = vdwg.mxu0
    %v516 = vmax.f32 %v505, 0.0
    %v517 = vmax.f32 %v508, 0.0
    %v518 = vmax.f32 %v511, 0.0
    %v519 = vmax.f32 %v514, 0.0
    %v520 = vld [vmem:[%s7] sm:$0xff]
    %v521 = vld [vmem:[%s7 + $0x8] sm:$0xff]
    %v522 = vld [vmem:[%s7 + $0x10] sm:$0xff]
    %v523 = vld [vmem:[%s7 + $0x18] sm:$0xff]
    %525 = vset.pattern.permute.xlu0 0
    %526 = vperm.xlu0 %525, %v520
    %v527 = vpop.permute.xlu0 %526
    %530 = vset.pattern.permute.xlu0 0
    %531 = vperm.xlu0 %530, %v521
    %v532 = vpop.permute.xlu0 %531
    %535 = vset.pattern.permute.xlu0 0
    %536 = vperm.xlu0 %535, %v522
    %v537 = vpop.permute.xlu0 %536
    %540 = vset.pattern.permute.xlu0 0
    %541 = vperm.xlu0 %540, %v523
    %v542 = vpop.permute.xlu0 %541
    %v544 = vmul.f32 %v527, %v516
    %v545 = vmul.f32 %v532, %v517
    %v546 = vmul.f32 %v537, %v518
    %v547 = vmul.f32 %v542, %v519
    %v548 = vadd.f32 %v544, %v545
    %v549 = vadd.f32 %v548, %v546
    %v550 = vadd.f32 %v549, %v547
    %v551 = vrot.slane %v550, 4
    %v552 = vadd.f32 %v550, %v551
    %v553 = vrot.slane %v552, 2
    %v554 = vadd.f32 %v552, %v553
    %v555 = vrot.slane %v554, 1
    %v556 = vadd.f32 %v554, %v555
    %v557 = vld [vmem:[#allocation2] sm:$0x1]
    %559 = vset.pattern.permute.xlu0 0
    %560 = vperm.xlu0 %559, %v557
    %v561 = vpop.permute.xlu0 %560
    %v563 = vperm.slane %v561, 0
    %v564 = vadd.f32 %v556, %v563
    %565 = vst [vmem:[#allocation3] sm:$0x1] %v564
    // Predicated region
    $region38: #{tpu_custom_call.1} parent=1 // pred_check
      _
    $region39: #{tpu_custom_call.1} parent=1 // pred_check_branch
      %567 = sbr.rel (0) target = $region41
    $region40: #{tpu_custom_call.1} parent=1 // pred_region
      %569 = vsyncadd [#allocation4], 0
      %s571 = sshll.u32 [#allocation3], 4
      %s572 = int_to_ptr.vmem [resolvable:$true] %s571
      %s573 = sshll.u32 %s9, 4
      %s574 = int_to_ptr.hbm [resolvable:$true] %s573
      %576 = dma.vmem_to_hbm [thread:$0]  %s572, 16, %s574, [#allocation4]
    $region41: #{tpu_custom_call.1} parent=1 // pred_fallthru
      _
    // Predicated region
    $region42: #{tpu_custom_call.1} parent=1 // pred_check
      _
    $region43: #{tpu_custom_call.1} parent=1 // pred_check_branch
      %578 = sbr.rel (0) target = $region45
    $region44: #{tpu_custom_call.1} parent=1 // pred_region
      %580 = dma.done [#allocation4], 16
    $region45: #{tpu_custom_call.1} parent=1 // pred_fallthru
      _
    %581 = vsyncpa [#allocation4], 1

</llo_original>
